<compile_context>
chip_gen: v7x
topology: tpu7x:2x2x1
jax: 0.10.0
libtpu: 0.0.40
codegen_flags: <defaults>
</compile_context>

<pallas_src>
import functools

import jax
import jax.numpy as jnp
from jax.experimental import pallas as pl
from jax.experimental.pallas import tpu as pltpu

LANES = 128
MAX_TILE_ROWS = 2048      # sweep 512-4096; 2048*128*4B = 1 MiB per f32 block
ROW_ALIGN = 32            # sublane multiple that covers f32 / bf16 / int8 blocks
NUM_PARTIALS = 2          # leading "parallel" grid axis (v7x has 2 TensorCores)
NEG_INF = float("-inf")


def _cdiv(a, b):
    return (a + b - 1) // b


def _round_up(a, b):
    return _cdiv(a, b) * b


def _masked_ce_kernel(x_ref, t_ref, m_ref, out_ref,
                      max_sc, se_sc, st_sc, stx_sc):
    # grid = (partial P, batch N, spatial tile, channel C); C innermost so the
    # (channel-invariant) mask block is revisited instead of re-DMA'd.
    n = pl.program_id(1)
    j = pl.program_id(2)
    c = pl.program_id(3)
    first = (n == 0) & (j == 0) & (c == 0)
    last = ((n == pl.num_programs(1) - 1)
            & (j == pl.num_programs(2) - 1)
            & (c == pl.num_programs(3) - 1))

    @pl.when(first)
    def _():
        max_sc[...] = jnp.full(max_sc.shape, NEG_INF, max_sc.dtype)
        se_sc[...] = jnp.zeros_like(se_sc)
        st_sc[...] = jnp.zeros_like(st_sc)
        stx_sc[...] = jnp.zeros_like(stx_sc)

    x = x_ref[0].astype(jnp.float32)      # (tile_rows, 128); cast in VMEM
    t = t_ref[0].astype(jnp.float32)
    mb = m_ref[0] != 0                    # int8 mask -> bool, no f32 mask in HBM

    # Pure elementwise (VPU-only) accumulation of sum(t) and sum(t*x).
    st_sc[...] += jnp.where(mb, t, 0.0)
    stx_sc[...] += jnp.where(mb, t * x, 0.0)

    # Per-lane streaming log-sum-exp (one sublane-direction reduce per tile,
    # no (1,1) scalar vregs in the hot loop).
    xm = jnp.where(mb, x, NEG_INF)
    tile_max = jnp.max(xm, axis=0, keepdims=True)             # (1, 128)
    m_old = max_sc[...]
    m_new = jnp.maximum(m_old, tile_max)
    scale = jnp.where(m_new == NEG_INF, 0.0, jnp.exp(m_old - m_new))
    e = jnp.where(mb, jnp.exp(x - m_new), 0.0)
    se_sc[...] = se_sc[...] * scale + jnp.sum(e, axis=0, keepdims=True)
    max_sc[...] = m_new

    @pl.when(last)
    def _():
        # Emit per-lane partial statistics; the (tiny) cross-lane / cross-partial
        # combine happens in the wrapper.
        st_lane = jnp.sum(st_sc[...], axis=0, keepdims=True)     # (1, 128)
        stx_lane = jnp.sum(stx_sc[...], axis=0, keepdims=True)   # (1, 128)
        out_ref[0, 0:1, :] = max_sc[...]
        out_ref[0, 1:2, :] = se_sc[...]
        out_ref[0, 2:3, :] = st_lane
        out_ref[0, 3:4, :] = stx_lane
        out_ref[0, 4:8, :] = jnp.zeros((4, LANES), jnp.float32)


@functools.partial(jax.jit, static_argnames=("reduction",))
def masked_cross_entropy(inp, target, mask, reduction: str = "mean"):
    """inp/target: (N, C, D, H, W); mask: (N, 1, D, H, W) (bool or 0/1)."""
    assert inp.shape == target.shape and inp.ndim == 5
    N, C, D, H, W = inp.shape
    assert mask.shape == (N, 1, D, H, W)
    S = D * H * W

    # Keep the original input/target dtypes (cast in VMEM); mask as int8, NOT
    # broadcast over channels.
    x2 = inp.reshape(N * C, S)
    t2 = target.reshape(N * C, S)
    m2 = (mask.reshape(N, S) != 0).astype(jnp.int8)

    rows_raw = _cdiv(S, LANES)
    tile_rows = min(MAX_TILE_ROWS,
                    _round_up(_cdiv(rows_raw, NUM_PARTIALS), ROW_ALIGN))
    rows = _round_up(rows_raw, NUM_PARTIALS * tile_rows)
    pad = rows * LANES - S
    if pad:
        # Padded tail carries mask == 0, so it contributes nothing.
        x2 = jnp.pad(x2, ((0, 0), (0, pad)))
        t2 = jnp.pad(t2, ((0, 0), (0, pad)))
        m2 = jnp.pad(m2, ((0, 0), (0, pad)))

    x3 = x2.reshape(N * C, rows, LANES)
    t3 = t2.reshape(N * C, rows, LANES)
    m3 = m2.reshape(N, rows, LANES)

    st_total = rows // tile_rows          # spatial tiles, multiple of NUM_PARTIALS
    stp = st_total // NUM_PARTIALS        # spatial tiles per partial

    xt_spec = pl.BlockSpec((1, tile_rows, LANES),
                           lambda p, n, j, c: (n * C + c, p * stp + j, 0))
    m_spec = pl.BlockSpec((1, tile_rows, LANES),
                          lambda p, n, j, c: (n, p * stp + j, 0))
    out_spec = pl.BlockSpec((1, 8, LANES), lambda p, n, j, c: (p, 0, 0))

    stats = pl.pallas_call(
        _masked_ce_kernel,
        out_shape=jax.ShapeDtypeStruct((NUM_PARTIALS, 8, LANES), jnp.float32),
        grid_spec=pltpu.PrefetchScalarGridSpec(
            num_scalar_prefetch=0,
            grid=(NUM_PARTIALS, N, stp, C),
            in_specs=[xt_spec, xt_spec, m_spec],
            out_specs=out_spec,
            scratch_shapes=[
                pltpu.VMEM((1, LANES), jnp.float32),          # running per-lane max
                pltpu.VMEM((1, LANES), jnp.float32),          # running per-lane sum-exp
                pltpu.VMEM((tile_rows, LANES), jnp.float32),  # sum(t)   accumulator
                pltpu.VMEM((tile_rows, LANES), jnp.float32),  # sum(t*x) accumulator
            ],
        ),
        compiler_params=pltpu.CompilerParams(
            dimension_semantics=("parallel", "arbitrary", "arbitrary", "arbitrary"),
            vmem_limit_bytes=48 * 1024 * 1024,
        ),
    )(x3, t3, m3)

    # Combine per-partial, per-lane statistics (tiny; runs in XLA).
    mx, se, st, stx = stats[:, 0], stats[:, 1], stats[:, 2], stats[:, 3]
    g_max = jnp.max(mx)
    lane_scale = jnp.where(mx == NEG_INF, 0.0, jnp.exp(mx - g_max))
    lse = g_max + jnp.log(jnp.sum(se * lane_scale))
    # If the mask is entirely empty this yields NaN, matching PyTorch's
    # degenerate masked_select/cross_entropy behaviour.
    loss = jnp.sum(st) * lse - jnp.sum(stx)
    # 'mean', 'sum' (and scalar 'none') coincide: a single un-batched sample.
    return loss


def _reference(inp, target, mask):
    mb = jnp.broadcast_to(mask.astype(bool), inp.shape)
    x = inp.astype(jnp.float32)
    t = target.astype(jnp.float32)
    lse = jax.scipy.special.logsumexp(jnp.where(mb, x, -jnp.inf))
    s_t = jnp.sum(jnp.where(mb, t, 0.0))
    s_tx = jnp.sum(jnp.where(mb, t * x, 0.0))
    return s_t * lse - s_tx


if __name__ == "__main__":
    key = jax.random.PRNGKey(0)
    k1, k2, k3 = jax.random.split(key, 3)

    N, C, D, H, W = 2, 4, 4, 8, 8
    inp = jax.random.normal(k1, (N, C, D, H, W), dtype=jnp.float32)
    target = jax.random.uniform(k2, (N, C, D, H, W), dtype=jnp.float32)
    mask = (jax.random.uniform(k3, (N, 1, D, H, W)) > 0.5)
    mask = mask.at[0, 0, 0, 0, 0].set(True)   # guarantee at least one element

    loss = jax.block_until_ready(masked_cross_entropy(inp, target, mask))
    ref = jax.block_until_ready(_reference(inp, target, mask))
    assert jnp.allclose(loss, ref, rtol=1e-4, atol=1e-4), (loss, ref)
    print("KERNEL_OK")
</pallas_src>

<mosaic_0001>
module attributes {stable_mosaic.version = 11 : i64} {
  func.func @_masked_ce_kernel(%arg0: i32, %arg1: i32, %arg2: i32, %arg3: i32, %arg4: memref<1x32x128xf32, #tpu.memory_space<vmem>>, %arg5: memref<1x32x128xf32, #tpu.memory_space<vmem>>, %arg6: memref<1x32x128xi8, #tpu.memory_space<vmem>>, %arg7: memref<1x8x128xf32, #tpu.memory_space<vmem>>, %arg8: memref<1x128xf32, #tpu.memory_space<vmem>>, %arg9: memref<1x128xf32, #tpu.memory_space<vmem>>, %arg10: memref<32x128xf32, #tpu.memory_space<vmem>>, %arg11: memref<32x128xf32, #tpu.memory_space<vmem>>) attributes {dimension_semantics = [#tpu.dimension_semantics<parallel>, #tpu.dimension_semantics<arbitrary>, #tpu.dimension_semantics<arbitrary>, #tpu.dimension_semantics<arbitrary>], iteration_bounds = array<i64: 2, 2, 1, 4>, scalar_prefetch = 0 : i64, scratch_operands = 4 : i64, tpu.core_type = #tpu.core_type<tc>, window_params = [{transform_indices = @transform_0, window_bounds = array<i64: 1, 32, 128>}, {transform_indices = @transform_1, window_bounds = array<i64: 1, 32, 128>}, {transform_indices = @transform_2, window_bounds = array<i64: 1, 32, 128>}, {transform_indices = @transform_3, window_bounds = array<i64: 1, 8, 128>}]} {
    %c0_i32 = arith.constant 0 : i32
    %0 = arith.cmpi eq, %arg1, %c0_i32 : i32
    %c0_i32_0 = arith.constant 0 : i32
    %1 = arith.cmpi eq, %arg2, %c0_i32_0 : i32
    %2 = arith.andi %0, %1 : i1
    %c0_i32_1 = arith.constant 0 : i32
    %3 = arith.cmpi eq, %arg3, %c0_i32_1 : i32
    %4 = arith.andi %2, %3 : i1
    %c1_i32 = arith.constant 1 : i32
    %5 = arith.cmpi eq, %arg1, %c1_i32 : i32
    %c0_i32_2 = arith.constant 0 : i32
    %6 = arith.cmpi eq, %arg2, %c0_i32_2 : i32
    %7 = arith.andi %5, %6 : i1
    %c3_i32 = arith.constant 3 : i32
    %8 = arith.cmpi eq, %arg3, %c3_i32 : i32
    %9 = arith.andi %7, %8 : i1
    %10 = arith.extui %4 : i1 to i32
    %c0_i32_3 = arith.constant 0 : i32
    %11 = arith.cmpi ne, %10, %c0_i32_3 : i32
    scf.if %11 {
      %cst_36 = arith.constant 0xFF800000 : f32
      %57 = vector.broadcast %cst_36 : f32 to vector<1x128xf32>
      %c0_37 = arith.constant 0 : index
      %c0_38 = arith.constant 0 : index
      %58 = vector.load %arg8[%c0_37, %c0_38] : memref<1x128xf32, #tpu.memory_space<vmem>>, vector<1x128xf32>
      tpu.vector_store %arg8[%c0_37, %c0_38], %57 {strides = array<i32>} : memref<1x128xf32, #tpu.memory_space<vmem>>, vector<1x128xf32>,
      %cst_39 = arith.constant 0.000000e+00 : f32
      %59 = vector.broadcast %cst_39 : f32 to vector<1x128xf32>
      %c0_40 = arith.constant 0 : index
      %c0_41 = arith.constant 0 : index
      %60 = vector.load %arg9[%c0_40, %c0_41] : memref<1x128xf32, #tpu.memory_space<vmem>>, vector<1x128xf32>
      tpu.vector_store %arg9[%c0_40, %c0_41], %59 {strides = array<i32>} : memref<1x128xf32, #tpu.memory_space<vmem>>, vector<1x128xf32>,
      %cst_42 = arith.constant 0.000000e+00 : f32
      %61 = vector.broadcast %cst_42 : f32 to vector<32x128xf32>
      %c0_43 = arith.constant 0 : index
      %c0_44 = arith.constant 0 : index
      %62 = vector.load %arg10[%c0_43, %c0_44] : memref<32x128xf32, #tpu.memory_space<vmem>>, vector<32x128xf32>
      tpu.vector_store %arg10[%c0_43, %c0_44], %61 {strides = array<i32>} : memref<32x128xf32, #tpu.memory_space<vmem>>, vector<32x128xf32>,
      %cst_45 = arith.constant 0.000000e+00 : f32
      %63 = vector.broadcast %cst_45 : f32 to vector<32x128xf32>
      %c0_46 = arith.constant 0 : index
      %c0_47 = arith.constant 0 : index
      %64 = vector.load %arg11[%c0_46, %c0_47] : memref<32x128xf32, #tpu.memory_space<vmem>>, vector<32x128xf32>
      tpu.vector_store %arg11[%c0_46, %c0_47], %63 {strides = array<i32>} : memref<32x128xf32, #tpu.memory_space<vmem>>, vector<32x128xf32>,
    } else {
    }
    %c0 = arith.constant 0 : index
    %c0_4 = arith.constant 0 : index
    %c0_5 = arith.constant 0 : index
    %12 = vector.load %arg4[%c0, %c0_4, %c0_5] : memref<1x32x128xf32, #tpu.memory_space<vmem>>, vector<1x32x128xf32>
    %13 = vector.shape_cast %12 : vector<1x32x128xf32> to vector<32x128xf32>
    %c0_6 = arith.constant 0 : index
    %c0_7 = arith.constant 0 : index
    %c0_8 = arith.constant 0 : index
    %14 = vector.load %arg5[%c0_6, %c0_7, %c0_8] : memref<1x32x128xf32, #tpu.memory_space<vmem>>, vector<1x32x128xf32>
    %15 = vector.shape_cast %14 : vector<1x32x128xf32> to vector<32x128xf32>
    %c0_9 = arith.constant 0 : index
    %c0_10 = arith.constant 0 : index
    %c0_11 = arith.constant 0 : index
    %16 = vector.load %arg6[%c0_9, %c0_10, %c0_11] : memref<1x32x128xi8, #tpu.memory_space<vmem>>, vector<1x32x128xi8>
    %17 = vector.shape_cast %16 : vector<1x32x128xi8> to vector<32x128xi8>
    %c0_i8 = arith.constant 0 : i8
    %18 = vector.broadcast %c0_i8 : i8 to vector<32x128xi8>
    %19 = arith.cmpi ne, %17, %18 : vector<32x128xi8>
    %c0_12 = arith.constant 0 : index
    %c0_13 = arith.constant 0 : index
    %20 = vector.load %arg10[%c0_12, %c0_13] : memref<32x128xf32, #tpu.memory_space<vmem>>, vector<32x128xf32>
    %cst = arith.constant 0.000000e+00 : f32
    %21 = vector.broadcast %cst : f32 to vector<32x128xf32>
    %22 = arith.select %19, %15, %21 : vector<32x128xi1>, vector<32x128xf32>
    %23 = arith.addf %20, %22 : vector<32x128xf32>
    %c0_14 = arith.constant 0 : index
    %c0_15 = arith.constant 0 : index
    %24 = vector.load %arg10[%c0_14, %c0_15] : memref<32x128xf32, #tpu.memory_space<vmem>>, vector<32x128xf32>
    tpu.vector_store %arg10[%c0_14, %c0_15], %23 {strides = array<i32>} : memref<32x128xf32, #tpu.memory_space<vmem>>, vector<32x128xf32>,
    %c0_16 = arith.constant 0 : index
    %c0_17 = arith.constant 0 : index
    %25 = vector.load %arg11[%c0_16, %c0_17] : memref<32x128xf32, #tpu.memory_space<vmem>>, vector<32x128xf32>
    %26 = arith.mulf %15, %13 : vector<32x128xf32>
    %cst_18 = arith.constant 0.000000e+00 : f32
    %27 = vector.broadcast %cst_18 : f32 to vector<32x128xf32>
    %28 = arith.select %19, %26, %27 : vector<32x128xi1>, vector<32x128xf32>
    %29 = arith.addf %25, %28 : vector<32x128xf32>
    %c0_19 = arith.constant 0 : index
    %c0_20 = arith.constant 0 : index
    %30 = vector.load %arg11[%c0_19, %c0_20] : memref<32x128xf32, #tpu.memory_space<vmem>>, vector<32x128xf32>
    tpu.vector_store %arg11[%c0_19, %c0_20], %29 {strides = array<i32>} : memref<32x128xf32, #tpu.memory_space<vmem>>, vector<32x128xf32>,
    %cst_21 = arith.constant 0xFF800000 : f32
    %31 = vector.broadcast %cst_21 : f32 to vector<32x128xf32>
    %32 = arith.select %19, %13, %31 : vector<32x128xi1>, vector<32x128xf32>
    %cst_22 = arith.constant dense<0xFF800000> : vector<128xf32>
    %33 = vector.multi_reduction <maximumf>, %32, %cst_22 [0] : vector<32x128xf32> to vector<128xf32>
    %34 = vector.shape_cast %33 : vector<128xf32> to vector<1x128xf32>
    %c0_23 = arith.constant 0 : index
    %c0_24 = arith.constant 0 : index
    %35 = vector.load %arg8[%c0_23, %c0_24] : memref<1x128xf32, #tpu.memory_space<vmem>>, vector<1x128xf32>
    %36 = arith.maximumf %35, %34 : vector<1x128xf32>
    %cst_25 = arith.constant 0xFF800000 : f32
    %37 = vector.broadcast %cst_25 : f32 to vector<1x128xf32>
    %38 = arith.cmpf oeq, %36, %37 : vector<1x128xf32>
    %39 = arith.subf %35, %36 : vector<1x128xf32>
    %40 = math.exp %39 : vector<1x128xf32>
    %cst_26 = arith.constant 0.000000e+00 : f32
    %41 = vector.broadcast %cst_26 : f32 to vector<1x128xf32>
    %42 = arith.select %38, %41, %40 : vector<1x128xi1>, vector<1x128xf32>
    %43 = vector.broadcast %36 : vector<1x128xf32> to vector<32x128xf32>
    %44 = arith.subf %13, %43 : vector<32x128xf32>
    %45 = math.exp %44 : vector<32x128xf32>
    %cst_27 = arith.constant 0.000000e+00 : f32
    %46 = vector.broadcast %cst_27 : f32 to vector<32x128xf32>
    %47 = arith.select %19, %45, %46 : vector<32x128xi1>, vector<32x128xf32>
    %c0_28 = arith.constant 0 : index
    %c0_29 = arith.constant 0 : index
    %48 = vector.load %arg9[%c0_28, %c0_29] : memref<1x128xf32, #tpu.memory_space<vmem>>, vector<1x128xf32>
    %49 = arith.mulf %48, %42 : vector<1x128xf32>
    %cst_30 = arith.constant dense<0.000000e+00> : vector<128xf32>
    %50 = vector.multi_reduction <add>, %47, %cst_30 [0] : vector<32x128xf32> to vector<128xf32>
    %51 = vector.shape_cast %50 : vector<128xf32> to vector<1x128xf32>
    %52 = arith.addf %49, %51 : vector<1x128xf32>
    %c0_31 = arith.constant 0 : index
    %c0_32 = arith.constant 0 : index
    %53 = vector.load %arg9[%c0_31, %c0_32] : memref<1x128xf32, #tpu.memory_space<vmem>>, vector<1x128xf32>
    tpu.vector_store %arg9[%c0_31, %c0_32], %52 {strides = array<i32>} : memref<1x128xf32, #tpu.memory_space<vmem>>, vector<1x128xf32>,
    %c0_33 = arith.constant 0 : index
    %c0_34 = arith.constant 0 : index
    %54 = vector.load %arg8[%c0_33, %c0_34] : memref<1x128xf32, #tpu.memory_space<vmem>>, vector<1x128xf32>
    tpu.vector_store %arg8[%c0_33, %c0_34], %36 {strides = array<i32>} : memref<1x128xf32, #tpu.memory_space<vmem>>, vector<1x128xf32>,
    %55 = arith.extui %9 : i1 to i32
    %c0_i32_35 = arith.constant 0 : i32
    %56 = arith.cmpi ne, %55, %c0_i32_35 : i32
    scf.if %56 {
      %c0_36 = arith.constant 0 : index
      %c0_37 = arith.constant 0 : index
      %57 = vector.load %arg10[%c0_36, %c0_37] : memref<32x128xf32, #tpu.memory_space<vmem>>, vector<32x128xf32>
      %cst_38 = arith.constant dense<0.000000e+00> : vector<128xf32>
      %58 = vector.multi_reduction <add>, %57, %cst_38 [0] : vector<32x128xf32> to vector<128xf32>
      %59 = vector.shape_cast %58 : vector<128xf32> to vector<1x128xf32>
      %c0_39 = arith.constant 0 : index
      %c0_40 = arith.constant 0 : index
      %60 = vector.load %arg11[%c0_39, %c0_40] : memref<32x128xf32, #tpu.memory_space<vmem>>, vector<32x128xf32>
      %cst_41 = arith.constant dense<0.000000e+00> : vector<128xf32>
      %61 = vector.multi_reduction <add>, %60, %cst_41 [0] : vector<32x128xf32> to vector<128xf32>
      %62 = vector.shape_cast %61 : vector<128xf32> to vector<1x128xf32>
      %c0_42 = arith.constant 0 : index
      %c0_43 = arith.constant 0 : index
      %63 = vector.load %arg8[%c0_42, %c0_43] : memref<1x128xf32, #tpu.memory_space<vmem>>, vector<1x128xf32>
      %c0_44 = arith.constant 0 : index
      %c0_45 = arith.constant 0 : index
      %c0_46 = arith.constant 0 : index
      %64 = vector.load %arg7[%c0_44, %c0_45, %c0_46] : memref<1x8x128xf32, #tpu.memory_space<vmem>>, vector<1x1x128xf32>
      %65 = vector.shape_cast %64 : vector<1x1x128xf32> to vector<1x128xf32>
      %66 = vector.shape_cast %63 : vector<1x128xf32> to vector<1x1x128xf32>
      tpu.vector_store %arg7[%c0_44, %c0_45, %c0_46], %66 {strides = array<i32>} : memref<1x8x128xf32, #tpu.memory_space<vmem>>, vector<1x1x128xf32>,
      %c0_47 = arith.constant 0 : index
      %c0_48 = arith.constant 0 : index
      %67 = vector.load %arg9[%c0_47, %c0_48] : memref<1x128xf32, #tpu.memory_space<vmem>>, vector<1x128xf32>
      %c0_49 = arith.constant 0 : index
      %c1 = arith.constant 1 : index
      %c0_50 = arith.constant 0 : index
      %68 = vector.load %arg7[%c0_49, %c1, %c0_50] : memref<1x8x128xf32, #tpu.memory_space<vmem>>, vector<1x1x128xf32>
      %69 = vector.shape_cast %68 : vector<1x1x128xf32> to vector<1x128xf32>
      %70 = vector.shape_cast %67 : vector<1x128xf32> to vector<1x1x128xf32>
      tpu.vector_store %arg7[%c0_49, %c1, %c0_50], %70 {strides = array<i32>} : memref<1x8x128xf32, #tpu.memory_space<vmem>>, vector<1x1x128xf32>,
      %c0_51 = arith.constant 0 : index
      %c2 = arith.constant 2 : index
      %c0_52 = arith.constant 0 : index
      %71 = vector.load %arg7[%c0_51, %c2, %c0_52] : memref<1x8x128xf32, #tpu.memory_space<vmem>>, vector<1x1x128xf32>
      %72 = vector.shape_cast %71 : vector<1x1x128xf32> to vector<1x128xf32>
      %73 = vector.shape_cast %59 : vector<1x128xf32> to vector<1x1x128xf32>
      tpu.vector_store %arg7[%c0_51, %c2, %c0_52], %73 {strides = array<i32>} : memref<1x8x128xf32, #tpu.memory_space<vmem>>, vector<1x1x128xf32>,
      %c0_53 = arith.constant 0 : index
      %c3 = arith.constant 3 : index
      %c0_54 = arith.constant 0 : index
      %74 = vector.load %arg7[%c0_53, %c3, %c0_54] : memref<1x8x128xf32, #tpu.memory_space<vmem>>, vector<1x1x128xf32>
      %75 = vector.shape_cast %74 : vector<1x1x128xf32> to vector<1x128xf32>
      %76 = vector.shape_cast %62 : vector<1x128xf32> to vector<1x1x128xf32>
      tpu.vector_store %arg7[%c0_53, %c3, %c0_54], %76 {strides = array<i32>} : memref<1x8x128xf32, #tpu.memory_space<vmem>>, vector<1x1x128xf32>,
      %cst_55 = arith.constant 0.000000e+00 : f32
      %77 = vector.broadcast %cst_55 : f32 to vector<4x128xf32>
      %c0_56 = arith.constant 0 : index
      %c4 = arith.constant 4 : index
      %c0_57 = arith.constant 0 : index
      %78 = vector.load %arg7[%c0_56, %c4, %c0_57] : memref<1x8x128xf32, #tpu.memory_space<vmem>>, vector<1x4x128xf32>
      %79 = vector.shape_cast %78 : vector<1x4x128xf32> to vector<4x128xf32>
      %80 = vector.shape_cast %77 : vector<4x128xf32> to vector<1x4x128xf32>
      tpu.vector_store %arg7[%c0_56, %c4, %c0_57], %80 {strides = array<i32>} : memref<1x8x128xf32, #tpu.memory_space<vmem>>, vector<1x4x128xf32>,
    } else {
    }
    return
  }
  func.func @transform_0(%arg0: i32, %arg1: i32, %arg2: i32, %arg3: i32) -> (i32, i32, i32) {
    %c4_i32 = arith.constant 4 : i32
    %0 = arith.muli %arg1, %c4_i32 : i32
    %1 = arith.addi %0, %arg3 : i32
    %c1_i32 = arith.constant 1 : i32
    %2 = arith.muli %arg0, %c1_i32 : i32
    %3 = arith.addi %2, %arg2 : i32
    %c0_i32 = arith.constant 0 : i32
    %c0_i32_0 = arith.constant 0 : i32
    return %1, %3, %c0_i32 : i32, i32, i32
  }
  func.func @transform_1(%arg0: i32, %arg1: i32, %arg2: i32, %arg3: i32) -> (i32, i32, i32) {
    %c4_i32 = arith.constant 4 : i32
    %0 = arith.muli %arg1, %c4_i32 : i32
    %1 = arith.addi %0, %arg3 : i32
    %c1_i32 = arith.constant 1 : i32
    %2 = arith.muli %arg0, %c1_i32 : i32
    %3 = arith.addi %2, %arg2 : i32
    %c0_i32 = arith.constant 0 : i32
    %c0_i32_0 = arith.constant 0 : i32
    return %1, %3, %c0_i32 : i32, i32, i32
  }
  func.func @transform_2(%arg0: i32, %arg1: i32, %arg2: i32, %arg3: i32) -> (i32, i32, i32) {
    %c1_i32 = arith.constant 1 : i32
    %0 = arith.muli %arg0, %c1_i32 : i32
    %1 = arith.addi %0, %arg2 : i32
    %c0_i32 = arith.constant 0 : i32
    %c0_i32_0 = arith.constant 0 : i32
    return %arg1, %1, %c0_i32 : i32, i32, i32
  }
  func.func @transform_3(%arg0: i32, %arg1: i32, %arg2: i32, %arg3: i32) -> (i32, i32, i32) {
    %c0_i32 = arith.constant 0 : i32
    %c0_i32_0 = arith.constant 0 : i32
    %c0_i32_1 = arith.constant 0 : i32
    return %arg0, %c0_i32, %c0_i32_0 : i32, i32, i32
  }
}

</mosaic_0001>

<llo_original>
// kernel: masked_cross_entropy.1
$region0: #{masked_cross_entropy.1}
  #allocation0 [shape = 'u32[]', space=smem, size = 0x4, offset = 0x4, fixed_abs, tag = 'smem constant byte address 0x4 - core index']
  #allocation1 [shape = 'u32[144,128]{1,0:T(1,128)}', space=vmem, size = 0x12000, scoped, tag = 'internal scratch']
  #allocation2 [shape = 'f32[1,128]{1,0:T(1,128)}', space=vmem, size = 0x200, scoped, tag = 'scratch operand']
  #allocation3 [shape = 'f32[1,128]{1,0:T(1,128)}', space=vmem, size = 0x200, scoped, tag = 'scratch operand']
  #allocation4 [shape = 'f32[32,128]{1,0:T(8,128)}', space=vmem, size = 0x4000, scoped, tag = 'scratch operand']
  #allocation5 [shape = 'f32[32,128]{1,0:T(8,128)}', space=vmem, size = 0x4000, scoped, tag = 'scratch operand']
  %s0 = inlined_call_operand.vmem [shape: f32[8,64,128], index: 0, kind: input, shape index: {}]
  %s1 = inlined_call_operand.vmem [shape: f32[8,64,128], index: 1, kind: input, shape index: {}]
  %s2 = inlined_call_operand.vmem [shape: s8[2,64,128], index: 2, kind: input, shape index: {}]
  %s3 = inlined_call_operand.vmem [shape: f32[2,8,128], index: 3, kind: output, shape index: {}]
  %s4 = sld [smem:[#allocation0]]
  $region53: #{masked_cross_entropy.1} parent=0
    _
  %s6 = ssub.s32 1, %s4
  %s7 = scalar_select 0, %s6, %s4
  loop: start=0, step=1, limit=18
  $region2: #{masked_cross_entropy.1} parent=0 // loop_pre_header
    _
  $region3: #{masked_cross_entropy.1} parent=0 // loop_header
    %s9 = sphi 0, %s13
    %p10 = scmp.ge.s32.totalorder %s9, 18
    %s16 = sphi 0, %s42
    %s17 = sphi 0, %s38
    %s18 = sphi 0, %s34
    %s19 = sphi 0, %s30
    %s20 = sphi 0, %s16
    %s21 = sphi 0, %s17
    %s22 = sphi 0, %s18
    %s23 = sphi 0, %s19
    %s24 = sphi 0, %s20
    %s25 = sphi 0, %s21
    %s26 = sphi 0, %s22
    %s27 = sphi 0, %s23
    %s53 = sphi 0, %s55
    %s56 = sphi 0, %s53
    %s57 = sphi 0, %s56
    %s73 = sphi 0, %s57
    %s87 = sphi 0, %s89
    %s90 = sphi 0, %s87
    %s91 = sphi 0, %s90
    %s107 = sphi 0, %s91
    %s117 = sphi 0, %s119
    %s120 = sphi 0, %s117
    %s121 = sphi 0, %s120
    %s137 = sphi 0, %s121
    %s143 = sphi 0, %s145
    %s146 = sphi 0, %s143
    %s147 = sphi 0, %s146
    %s163 = sphi 0, %s147
  $region4: #{masked_cross_entropy.1} parent=0 // loop_header_branch
    %12 = sbr.rel (%p10) target = $region8
  $region5: #{masked_cross_entropy.1} parent=0 // loop_body
    %s14 = ssub.s32 %s9, 1
    %s15 = ssub.s32 %s9, 2
    %s28 = sadd.s32 1, %s19
    %p29 = scmp.ge.s32.totalorder %s28, 4
    %s30 = scalar_select %p29, 0, %s28
    %s31 = sadd.s32 1, %s18
    %s32 = scalar_select %p29, %s31, %s18
    %p33 = scmp.ge.s32.totalorder %s32, 1
    %s34 = scalar_select %p33, 0, %s32
    %s35 = sadd.s32 1, %s17
    %s36 = scalar_select %p33, %s35, %s17
    %p37 = scmp.ge.s32.totalorder %s36, 2
    %s38 = scalar_select %p37, 0, %s36
    %s39 = sadd.s32 1, %s16
    %s40 = scalar_select %p37, %s39, %s16
    %p41 = scmp.ge.s32.totalorder %s40, 2
    %s42 = scalar_select %p41, 0, %s40
    %s43 = smul.u32 %s17, 4
    %s44 = sadd.s32 %s43, %s19
    %s45 = sadd.s32 %s16, %s18
    %s46 = smul.u32 %s38, 4
    %s47 = sadd.s32 %s46, %s30
    %s48 = sadd.s32 %s42, %s34
    %s49 = ssub.s32 %s44, %s47
    %s50 = ssub.s32 %s45, %s48
    %s51 = sor.u32 %s49, %s50
    %p52 = scmp.eq.s32.totalorder %s51, 0
    %s54 = sadd.s32 %s53, 1
    %s55 = scalar_select %p52, %s53, %s54
    %p58 = pneg %p52
    %p59 = scmp.eq.s32.totalorder %s9, 15
    %p60 = por %p58, %p59
    %p61 = scmp.ne.s32.totalorder %s53, %s56
    %p62 = scmp.eq.s32.totalorder %s9, 0
    %p63 = por %p61, %p62
    %p64 = scmp.ne.s32.totalorder %s53, %s56
    %p65 = scmp.eq.s32.totalorder %s14, 15
    %p66 = por %p64, %p65
    %p67 = scmp.ne.s32.totalorder %s56, %s57
    %p68 = scmp.eq.s32.totalorder %s14, 0
    %p69 = por %p67, %p68
    %p70 = scmp.ne.s32.totalorder %s56, %s57
    %p71 = scmp.eq.s32.totalorder %s15, 15
    %p72 = por %p70, %p71
    %p74 = scmp.ne.s32.totalorder %s57, %s73
    %p75 = scmp.eq.s32.totalorder %s15, 0
    %p76 = por %p74, %p75
    %s77 = smul.u32 %s17, 4
    %s78 = sadd.s32 %s77, %s19
    %s79 = sadd.s32 %s16, %s18
    %s80 = smul.u32 %s38, 4
    %s81 = sadd.s32 %s80, %s30
    %s82 = sadd.s32 %s42, %s34
    %s83 = ssub.s32 %s78, %s81
    %s84 = ssub.s32 %s79, %s82
    %s85 = sor.u32 %s83, %s84
    %p86 = scmp.eq.s32.totalorder %s85, 0
    %s88 = sadd.s32 %s87, 1
    %s89 = scalar_select %p86, %s87, %s88
    %p92 = pneg %p86
    %p93 = scmp.eq.s32.totalorder %s9, 15
    %p94 = por %p92, %p93
    %p95 = scmp.ne.s32.totalorder %s87, %s90
    %p96 = scmp.eq.s32.totalorder %s9, 0
    %p97 = por %p95, %p96
    %p98 = scmp.ne.s32.totalorder %s87, %s90
    %p99 = scmp.eq.s32.totalorder %s14, 15
    %p100 = por %p98, %p99
    %p101 = scmp.ne.s32.totalorder %s90, %s91
    %p102 = scmp.eq.s32.totalorder %s14, 0
    %p103 = por %p101, %p102
    %p104 = scmp.ne.s32.totalorder %s90, %s91
    %p105 = scmp.eq.s32.totalorder %s15, 15
    %p106 = por %p104, %p105
    %p108 = scmp.ne.s32.totalorder %s91, %s107
    %p109 = scmp.eq.s32.totalorder %s15, 0
    %p110 = por %p108, %p109
    %s111 = sadd.s32 %s16, %s18
    %s112 = sadd.s32 %s42, %s34
    %s113 = ssub.s32 %s17, %s38
    %s114 = ssub.s32 %s111, %s112
    %s115 = sor.u32 %s113, %s114
    %p116 = scmp.eq.s32.totalorder %s115, 0
    %s118 = sadd.s32 %s117, 1
    %s119 = scalar_select %p116, %s117, %s118
    %p122 = pneg %p116
    %p123 = scmp.eq.s32.totalorder %s9, 15
    %p124 = por %p122, %p123
    %p125 = scmp.ne.s32.totalorder %s117, %s120
    %p126 = scmp.eq.s32.totalorder %s9, 0
    %p127 = por %p125, %p126
    %p128 = scmp.ne.s32.totalorder %s117, %s120
    %p129 = scmp.eq.s32.totalorder %s14, 15
    %p130 = por %p128, %p129
    %p131 = scmp.ne.s32.totalorder %s120, %s121
    %p132 = scmp.eq.s32.totalorder %s14, 0
    %p133 = por %p131, %p132
    %p134 = scmp.ne.s32.totalorder %s120, %s121
    %p135 = scmp.eq.s32.totalorder %s15, 15
    %p136 = por %p134, %p135
    %p138 = scmp.ne.s32.totalorder %s121, %s137
    %p139 = scmp.eq.s32.totalorder %s15, 0
    %p140 = por %p138, %p139
    %s141 = ssub.s32 %s16, %s42
    %p142 = scmp.eq.s32.totalorder %s141, 0
    %s144 = sadd.s32 %s143, 1
    %s145 = scalar_select %p142, %s143, %s144
    %p148 = pneg %p142
    %p149 = scmp.eq.s32.totalorder %s9, 15
    %p150 = por %p148, %p149
    %p151 = scmp.ne.s32.totalorder %s143, %s146
    %p152 = scmp.eq.s32.totalorder %s9, 0
    %p153 = por %p151, %p152
    %p154 = scmp.ne.s32.totalorder %s143, %s146
    %p155 = scmp.eq.s32.totalorder %s14, 15
    %p156 = por %p154, %p155
    %p157 = scmp.ne.s32.totalorder %s146, %s147
    %p158 = scmp.eq.s32.totalorder %s14, 0
    %p159 = por %p157, %p158
    %p160 = scmp.ne.s32.totalorder %s146, %s147
    %p161 = scmp.eq.s32.totalorder %s15, 15
    %p162 = por %p160, %p161
    %p164 = scmp.ne.s32.totalorder %s147, %s163
    %p165 = scmp.eq.s32.totalorder %s15, 0
    %p166 = por %p164, %p165
    %p167 = scmp.le.s32.totalorder 1, %s9
    %p168 = scmp.lt.s32.totalorder %s9, 17
    %p169 = pnand %p167, %p168
    %p170 = pneg %p169
    // Predicated region
    $region9: #{masked_cross_entropy.1} parent=5 // pred_check
      _
    $region10: #{masked_cross_entropy.1} parent=5 // pred_check_branch
      %172 = sbr.rel (%p169) target = $region12
    $region11: #{masked_cross_entropy.1} parent=5 // pred_region
      %s173 = ssub.s32 %s9, 1
    $region12: #{masked_cross_entropy.1} parent=5 // pred_fallthru
      _
    %p174 = scmp.lt.s32.totalorder %s9, 16
    // Predicated region
    $region13: #{masked_cross_entropy.1} parent=5 // pred_check
      %p175 = pneg %p174
    $region14: #{masked_cross_entropy.1} parent=5 // pred_check_branch
      %177 = sbr.rel (%p175) target = $region16
    $region15: #{masked_cross_entropy.1} parent=5 // pred_region
      // Predicated region
      $region17: #{masked_cross_entropy.1} parent=15 // pred_check
        %p178 = pneg %p63
      $region18: #{masked_cross_entropy.1} parent=15 // pred_check_branch
        %180 = sbr.rel (%p178) target = $region20
      $region19: #{masked_cross_entropy.1} parent=15 // pred_region
        %s181 = smul.u32 %s17, 4
        %s182 = sadd.s32 %s181, %s19
        %s183 = sadd.s32 %s16, %s18
        %s184 = smul.u32 4, %s183
        %p185 = scmp.lt.s32.totalorder %s182, 7
        %s186 = scalar_select %p185, %s182, 7
        %p187 = scmp.lt.s32.totalorder %s184, 7
        %s188 = scalar_select %p187, %s184, 7
        %s189 = smul.addr %s186, 8
        %s190 = sadd.s32 %s188, %s189
        %s191 = smul.addr %s190, 8
        %s192 = scalar_lea.vmem %s0, %s191
        %s193 = smul.u32 %s17, 4
        %s194 = sadd.s32 %s193, %s19
        %s195 = sadd.s32 %s16, %s18
        %s196 = smul.u32 4, %s195
      $region20: #{masked_cross_entropy.1} parent=15 // pred_fallthru
        _
      // Predicated region
      $region21: #{masked_cross_entropy.1} parent=15 // pred_check
        %p197 = pneg %p97
      $region22: #{masked_cross_entropy.1} parent=15 // pred_check_branch
        %199 = sbr.rel (%p197) target = $region24
      $region23: #{masked_cross_entropy.1} parent=15 // pred_region
        %s200 = smul.u32 %s17, 4
        %s201 = sadd.s32 %s200, %s19
        %s202 = sadd.s32 %s16, %s18
        %s203 = smul.u32 4, %s202
        %p204 = scmp.lt.s32.totalorder %s201, 7
        %s205 = scalar_select %p204, %s201, 7
        %p206 = scmp.lt.s32.totalorder %s203, 7
        %s207 = scalar_select %p206, %s203, 7
        %s208 = smul.addr %s205, 8
        %s209 = sadd.s32 %s207, %s208
        %s210 = smul.addr %s209, 8
        %s211 = scalar_lea.vmem %s1, %s210
        %s212 = smul.u32 %s17, 4
        %s213 = sadd.s32 %s212, %s19
        %s214 = sadd.s32 %s16, %s18
        %s215 = smul.u32 4, %s214
      $region24: #{masked_cross_entropy.1} parent=15 // pred_fallthru
        _
      // Predicated region
      $region25: #{masked_cross_entropy.1} parent=15 // pred_check
        %p216 = pneg %p127
      $region26: #{masked_cross_entropy.1} parent=15 // pred_check_branch
        %218 = sbr.rel (%p216) target = $region28
      $region27: #{masked_cross_entropy.1} parent=15 // pred_region
        %s219 = sadd.s32 %s16, %s18
        %p220 = scmp.lt.s32.totalorder %s17, 1
        %s221 = scalar_select %p220, %s17, 1
        %p222 = scmp.lt.s32.totalorder %s219, 1
        %s223 = scalar_select %p222, %s219, 1
        %s224 = smul.addr %s221, 2
        %s225 = sadd.s32 %s223, %s224
        %s226 = smul.addr %s225, 8
        %s227 = scalar_lea.vmem %s2, %s226
        %s228 = sadd.s32 %s16, %s18
      $region28: #{masked_cross_entropy.1} parent=15 // pred_fallthru
        _
    $region16: #{masked_cross_entropy.1} parent=5 // pred_fallthru
      _
    %p229 = scmp.le.s32.totalorder 1, %s9
    %p230 = scmp.lt.s32.totalorder %s9, 17
    %p231 = pnand %p229, %p230
    %p232 = pneg %p231
    // Predicated region
    $region29: #{masked_cross_entropy.1} parent=5 // pred_check
      _
    $region30: #{masked_cross_entropy.1} parent=5 // pred_check_branch
      %234 = sbr.rel (%p231) target = $region32
    $region31: #{masked_cross_entropy.1} parent=5 // pred_region
      %s235 = ssub.s32 %s9, 1
      %s236 = smul.u32 %s21, 4
      %s237 = sadd.s32 %s236, %s23
      %s238 = sadd.s32 %s20, %s22
      %s239 = smul.u32 4, %s238
      %p240 = scmp.lt.s32.totalorder %s237, 7
      %s241 = scalar_select %p240, %s237, 7
      %p242 = scmp.lt.s32.totalorder %s239, 7
      %s243 = scalar_select %p242, %s239, 7
      %s244 = smul.addr %s241, 8
      %s245 = sadd.s32 %s243, %s244
      %s246 = smul.addr %s245, 8
      %s247 = scalar_lea.vmem %s0, %s246
      %p248 = pneg %p69
      %p249 = pneg %p66
      %s250 = smul.u32 %s21, 4
      %s251 = sadd.s32 %s250, %s23
      %s252 = sadd.s32 %s20, %s22
      %s253 = smul.u32 4, %s252
      %p254 = scmp.lt.s32.totalorder %s251, 7
      %s255 = scalar_select %p254, %s251, 7
      %p256 = scmp.lt.s32.totalorder %s253, 7
      %s257 = scalar_select %p256, %s253, 7
      %s258 = smul.addr %s255, 8
      %s259 = sadd.s32 %s257, %s258
      %s260 = smul.addr %s259, 8
      %s261 = scalar_lea.vmem %s1, %s260
      %p262 = pneg %p103
      %p263 = pneg %p100
      %s264 = sadd.s32 %s20, %s22
      %p265 = scmp.lt.s32.totalorder %s21, 1
      %s266 = scalar_select %p265, %s21, 1
      %p267 = scmp.lt.s32.totalorder %s264, 1
      %s268 = scalar_select %p267, %s264, 1
      %s269 = smul.addr %s266, 2
      %s270 = sadd.s32 %s268, %s269
      %s271 = smul.addr %s270, 8
      %s272 = scalar_lea.vmem %s2, %s271
      %p273 = pneg %p133
      %p274 = pneg %p130
      %p275 = pneg %p159
      %p276 = pneg %p156
      %p277 = scmp.lt.s32.totalorder %s20, 1
      %s278 = scalar_select %p277, %s20, 1
      %s279 = smul.addr %s278, 8
      %s280 = scalar_lea.vmem %s3, %s279
      %s281 = smul.u32 %s21, 4
      %s282 = sadd.s32 %s281, %s23
      %s283 = sadd.s32 %s20, %s22
      %s284 = smul.u32 4, %s283
      %p285 = scmp.lt.s32.totalorder %s282, 7
      %s286 = scalar_select %p285, %s282, 7
      %p287 = scmp.lt.s32.totalorder %s284, 7
      %s288 = scalar_select %p287, %s284, 7
      %s289 = smul.addr %s286, 8
      %s290 = sadd.s32 %s288, %s289
      %s291 = smul.addr %s290, 8
      %s292 = scalar_lea.vmem %s0, %s291
      %s293 = smul.u32 %s21, 4
      %s294 = sadd.s32 %s293, %s23
      %s295 = sadd.s32 %s20, %s22
      %s296 = smul.u32 4, %s295
      %s297 = smul.u32 %s21, 4
      %s298 = sadd.s32 %s297, %s23
      %s299 = sadd.s32 %s20, %s22
      %s300 = smul.u32 4, %s299
      %p301 = scmp.lt.s32.totalorder %s298, 7
      %s302 = scalar_select %p301, %s298, 7
      %p303 = scmp.lt.s32.totalorder %s300, 7
      %s304 = scalar_select %p303, %s300, 7
      %s305 = smul.addr %s302, 8
      %s306 = sadd.s32 %s304, %s305
      %s307 = smul.addr %s306, 8
      %s308 = scalar_lea.vmem %s1, %s307
      %s309 = smul.u32 %s21, 4
      %s310 = sadd.s32 %s309, %s23
      %s311 = sadd.s32 %s20, %s22
      %s312 = smul.u32 4, %s311
      %s313 = sadd.s32 %s20, %s22
      %p314 = scmp.lt.s32.totalorder %s21, 1
      %s315 = scalar_select %p314, %s21, 1
      %p316 = scmp.lt.s32.totalorder %s313, 1
      %s317 = scalar_select %p316, %s313, 1
      %s318 = smul.addr %s315, 2
      %s319 = sadd.s32 %s317, %s318
      %s320 = smul.addr %s319, 8
      %s321 = scalar_lea.vmem %s2, %s320
      %s322 = sadd.s32 %s20, %s22
      %p323 = scmp.lt.s32.totalorder %s20, 1
      %s324 = scalar_select %p323, %s20, 1
      %s325 = smul.addr %s324, 8
      %s326 = scalar_lea.vmem %s3, %s325
      %p329 = scmp.eq.s32.totalorder %s21, 0
      %p330 = scmp.eq.s32.totalorder %s22, 0
      %p331 = pnand %p329, %p330
      %p332 = pneg %p331
      %p333 = scmp.eq.s32.totalorder %s23, 0
      %p334 = pnand %p332, %p333
      %p335 = pneg %p334
      %p336 = scmp.eq.s32.totalorder %s21, 1
      %p337 = pnand %p336, %p330
      %p338 = pneg %p337
      %p339 = scmp.eq.s32.totalorder %s23, 3
      %p340 = pnand %p338, %p339
      %p341 = pneg %p340
      // Predicated region
      $region33: #{masked_cross_entropy.1} parent=31 // pred_check
        _
      $region34: #{masked_cross_entropy.1} parent=31 // pred_check_branch
        %343 = sbr.rel (%p334) target = $region36
      $region35: #{masked_cross_entropy.1} parent=31 // pred_region
        %344 = vst [vmem:[#allocation2] sm:$0x1] -inf
        %345 = vst [vmem:[#allocation3] sm:$0x1] 0.0
        %346 = vst [vmem:[#allocation4] sm:$0xff] 0.0
        %347 = vst [vmem:[#allocation4 + $0x8] sm:$0xff] 0.0
        %348 = vst [vmem:[#allocation4 + $0x10] sm:$0xff] 0.0
        %349 = vst [vmem:[#allocation4 + $0x18] sm:$0xff] 0.0
        %350 = vst [vmem:[#allocation5] sm:$0xff] 0.0
        %351 = vst [vmem:[#allocation5 + $0x8] sm:$0xff] 0.0
        %352 = vst [vmem:[#allocation5 + $0x10] sm:$0xff] 0.0
        %353 = vst [vmem:[#allocation5 + $0x18] sm:$0xff] 0.0
      $region36: #{masked_cross_entropy.1} parent=31 // pred_fallthru
        _
      %v354 = vld [vmem:[%s292] sm:$0xff]
      %v355 = vld [vmem:[%s292 + $0x8] sm:$0xff]
      %v356 = vld [vmem:[%s292 + $0x10] sm:$0xff]
      %v357 = vld [vmem:[%s292 + $0x18] sm:$0xff]
      %v358 = vld [vmem:[%s308] sm:$0xff]
      %v359 = vld [vmem:[%s308 + $0x8] sm:$0xff]
      %v360 = vld [vmem:[%s308 + $0x10] sm:$0xff]
      %v361 = vld [vmem:[%s308 + $0x18] sm:$0xff]
      %v362 = vld [vmem:[%s321] sm:$0xff]
      %vm363 = vnez %v362
      %v364 = vld [vmem:[#allocation4] sm:$0xff]
      %v365 = vld [vmem:[#allocation4 + $0x8] sm:$0xff]
      %v366 = vld [vmem:[#allocation4 + $0x10] sm:$0xff]
      %v367 = vld [vmem:[#allocation4 + $0x18] sm:$0xff]
      %v368 = vsel %vm363, 16843009, 0
      %v369 = vunpack.c.0.s8 %v368
      %v370 = vunpack.c.1.s8 %v368
      %v371 = vunpack.c.2.s8 %v368
      %v372 = vunpack.c.3.s8 %v368
      %v373 = vpack.c.b16 %v369, %v369
      %v374 = vpack.c.b8 %v373, %v373
      %v375 = vpack.c.b16 %v370, %v370
      %v376 = vpack.c.b8 %v375, %v375
      %v377 = vpack.c.b16 %v371, %v371
      %v378 = vpack.c.b8 %v377, %v377
      %v379 = vpack.c.b16 %v372, %v372
      %v380 = vpack.c.b8 %v379, %v379
      %vm381 = vnez %v374
      %vm382 = vnez %v376
      %vm383 = vnez %v378
      %vm384 = vnez %v380
      %v385 = vsel %vm381, 16843009, 0
      %v386 = vsel %vm382, 16843009, 0
      %v387 = vsel %vm383, 16843009, 0
      %v388 = vsel %vm384, 16843009, 0
      %v389 = vunpack.c.0.s8 %v385
      %v390 = vunpack.c.0.s8 %v386
      %v391 = vunpack.c.0.s8 %v387
      %v392 = vunpack.c.0.s8 %v388
      %vm393 = vcmp.ne.s32.totalorder %v389, 0
      %vm394 = vcmp.ne.s32.totalorder %v390, 0
      %vm395 = vcmp.ne.s32.totalorder %v391, 0
      %vm396 = vcmp.ne.s32.totalorder %v392, 0
      %v397 = vsel %vm393, %v358, 0.0
      %v398 = vsel %vm394, %v359, 0.0
      %v399 = vsel %vm395, %v360, 0.0
      %v400 = vsel %vm396, %v361, 0.0
      %v401 = vadd.f32 %v364, %v397
      %v402 = vadd.f32 %v365, %v398
      %v403 = vadd.f32 %v366, %v399
      %v404 = vadd.f32 %v367, %v400
      %405 = vst [vmem:[#allocation4] sm:$0xff] %v401
      %406 = vst [vmem:[#allocation4 + $0x8] sm:$0xff] %v402
      %407 = vst [vmem:[#allocation4 + $0x10] sm:$0xff] %v403
      %408 = vst [vmem:[#allocation4 + $0x18] sm:$0xff] %v404
      %v409 = vld [vmem:[#allocation5] sm:$0xff]
      %v410 = vld [vmem:[#allocation5 + $0x8] sm:$0xff]
      %v411 = vld [vmem:[#allocation5 + $0x10] sm:$0xff]
      %v412 = vld [vmem:[#allocation5 + $0x18] sm:$0xff]
      %v413 = vmul.f32 %v358, %v354
      %v414 = vmul.f32 %v359, %v355
      %v415 = vmul.f32 %v360, %v356
      %v416 = vmul.f32 %v361, %v357
      %v417 = vsel %vm393, %v413, 0.0
      %v418 = vsel %vm394, %v414, 0.0
      %v419 = vsel %vm395, %v415, 0.0
      %v420 = vsel %vm396, %v416, 0.0
      %v421 = vadd.f32 %v409, %v417
      %v422 = vadd.f32 %v410, %v418
      %v423 = vadd.f32 %v411, %v419
      %v424 = vadd.f32 %v412, %v420
      %425 = vst [vmem:[#allocation5] sm:$0xff] %v421
      %426 = vst [vmem:[#allocation5 + $0x8] sm:$0xff] %v422
      %427 = vst [vmem:[#allocation5 + $0x10] sm:$0xff] %v423
      %428 = vst [vmem:[#allocation5 + $0x18] sm:$0xff] %v424
      %v429 = vsel %vm393, %v354, -inf
      %v430 = vsel %vm394, %v355, -inf
      %v431 = vsel %vm395, %v356, -inf
      %v432 = vsel %vm396, %v357, -inf
      %v433 = vmax.f32 %v429, %v430
      %v434 = vmax.f32 %v431, %v432
      %v435 = vmax.f32 %v433, %v434
      %v436 = vrot.slane %v435, 4
      %v437 = vmax.f32 %v435, %v436
      %v438 = vrot.slane %v437, 2
      %v439 = vmax.f32 %v437, %v438
      %v440 = vrot.slane %v439, 1
      %v441 = vmax.f32 %v439, %v440
      %v442 = vld [vmem:[#allocation2] sm:$0x1]
      %v443 = vmax.f32 %v442, %v441
      %vm444 = vcmp.eq.f32.partialorder %v443, -inf
      %v445 = vsub.f32 %v442, %v443
      %v446 = vmul.f32 %v445, 1.442695
      %v447 = vpow.pop %v446
      %v448 = vsel %vm444, 0.0, %v447
      %v450 = vlaneseq
      %v451 = vshrl.u32 %v450, 7
      %v452 = vsub.s32 0, %v451
      %v453 = vrot.slane %v443, %v452
      %v455 = vsub.f32 %v354, %v453
      %v456 = vsub.f32 %v355, %v453
      %v457 = vsub.f32 %v356, %v453
      %v458 = vsub.f32 %v357, %v453
      %v459 = vmul.f32 %v455, 1.442695
      %v460 = vpow.pop %v459
      %v461 = vmul.f32 %v456, 1.442695
      %v462 = vpow.pop %v461
      %v463 = vmul.f32 %v457, 1.442695
      %v464 = vpow.pop %v463
      %v465 = vmul.f32 %v458, 1.442695
      %v466 = vpow.pop %v465
      %v467 = vsel %vm393, %v460, 0.0
      %v468 = vsel %vm394, %v462, 0.0
      %v469 = vsel %vm395, %v464, 0.0
      %v470 = vsel %vm396, %v466, 0.0
      %v471 = vld [vmem:[#allocation3] sm:$0x1]
      %v472 = vmul.f32 %v471, %v448
      %v473 = vadd.f32 %v467, %v468
      %v474 = vadd.f32 %v473, %v469
      %v475 = vadd.f32 %v474, %v470
      %v476 = vrot.slane %v475, 4
      %v477 = vadd.f32 %v475, %v476
      %v478 = vrot.slane %v477, 2
      %v479 = vadd.f32 %v477, %v478
      %v480 = vrot.slane %v479, 1
      %v481 = vadd.f32 %v479, %v480
      %v482 = vadd.f32 %v472, %v481
      %483 = vst [vmem:[#allocation3] sm:$0x1] %v482
      %484 = vst [vmem:[#allocation2] sm:$0x1] %v443
      // Predicated region
      $region37: #{masked_cross_entropy.1} parent=31 // pred_check
        _
      $region38: #{masked_cross_entropy.1} parent=31 // pred_check_branch
        %486 = sbr.rel (%p340) target = $region40
      $region39: #{masked_cross_entropy.1} parent=31 // pred_region
        %v487 = vld [vmem:[#allocation4] sm:$0xff]
        %v488 = vld [vmem:[#allocation4 + $0x8] sm:$0xff]
        %v489 = vld [vmem:[#allocation4 + $0x10] sm:$0xff]
        %v490 = vld [vmem:[#allocation4 + $0x18] sm:$0xff]
        %v491 = vadd.f32 %v487, %v488
        %v492 = vadd.f32 %v491, %v489
        %v493 = vadd.f32 %v492, %v490
        %v494 = vrot.slane %v493, 4
        %v495 = vadd.f32 %v493, %v494
        %v496 = vrot.slane %v495, 2
        %v497 = vadd.f32 %v495, %v496
        %v498 = vrot.slane %v497, 1
        %v499 = vadd.f32 %v497, %v498
        %v500 = vld [vmem:[#allocation5] sm:$0xff]
        %v501 = vld [vmem:[#allocation5 + $0x8] sm:$0xff]
        %v502 = vld [vmem:[#allocation5 + $0x10] sm:$0xff]
        %v503 = vld [vmem:[#allocation5 + $0x18] sm:$0xff]
        %v504 = vadd.f32 %v500, %v501
        %v505 = vadd.f32 %v504, %v502
        %v506 = vadd.f32 %v505, %v503
        %v507 = vrot.slane %v506, 4
        %v508 = vadd.f32 %v506, %v507
        %v509 = vrot.slane %v508, 2
        %v510 = vadd.f32 %v508, %v509
        %v511 = vrot.slane %v510, 1
        %v512 = vadd.f32 %v510, %v511
        %v513 = vld [vmem:[#allocation2] sm:$0x1]
        %514 = vst [vmem:[%s326] sm:$0x1] %v513
        %v515 = vld [vmem:[#allocation3] sm:$0x1]
        %516 = vst [vmem:[%s326 + $0x1] sm:$0x1] %v515
        %517 = vst [vmem:[%s326 + $0x2] sm:$0x1] %v499
        %518 = vst [vmem:[%s326 + $0x3] sm:$0x1] %v512
        %519 = vst [vmem:[%s326 + $0x4] sm:$0xf] 0.0
      $region40: #{masked_cross_entropy.1} parent=31 // pred_fallthru
        _
      %p520 = scmp.lt.s32.totalorder %s20, 1
      %s521 = scalar_select %p520, %s20, 1
      %s522 = smul.addr %s521, 8
      %s523 = scalar_lea.vmem %s3, %s522
      // Predicated region
      $region41: #{masked_cross_entropy.1} parent=31 // pred_check
        %p524 = pneg %p156
      $region42: #{masked_cross_entropy.1} parent=31 // pred_check_branch
        %526 = sbr.rel (%p524) target = $region44
      $region43: #{masked_cross_entropy.1} parent=31 // pred_region
        _
      $region44: #{masked_cross_entropy.1} parent=31 // pred_fallthru
        _
    $region32: #{masked_cross_entropy.1} parent=5 // pred_fallthru
      _
    %p527 = scmp.le.s32.totalorder 2, %s9
    // Predicated region
    $region45: #{masked_cross_entropy.1} parent=5 // pred_check
      %p528 = pneg %p527
    $region46: #{masked_cross_entropy.1} parent=5 // pred_check_branch
      %530 = sbr.rel (%p528) target = $region48
    $region47: #{masked_cross_entropy.1} parent=5 // pred_region
      %s531 = ssub.s32 %s9, 2
      // Predicated region
      $region49: #{masked_cross_entropy.1} parent=47 // pred_check
        %p532 = pneg %p162
      $region50: #{masked_cross_entropy.1} parent=47 // pred_check_branch
        %534 = sbr.rel (%p532) target = $region52
      $region51: #{masked_cross_entropy.1} parent=47 // pred_region
        %p535 = scmp.lt.s32.totalorder %s24, 1
        %s536 = scalar_select %p535, %s24, 1
        %s537 = smul.addr %s536, 8
        %s538 = scalar_lea.vmem %s3, %s537
      $region52: #{masked_cross_entropy.1} parent=47 // pred_fallthru
        _
    $region48: #{masked_cross_entropy.1} parent=5 // pred_fallthru
      _
  $region6: #{masked_cross_entropy.1} parent=0 // loop_footer
    %s13 = sadd.s32 1, %s9
  $region7: #{masked_cross_entropy.1} parent=0 // loop_footer_branch
    %8 = sbr.rel target = $region3
  $region8: #{masked_cross_entropy.1} parent=0 // loop_exit
    _

</llo_original>
